<compile_context>
chip_gen: v7x
topology: tpu7x:2x2x1
jax: 0.10.0
libtpu: 0.0.40
codegen_flags: <defaults>
</compile_context>

<pallas_src>
import jax
import jax.numpy as jnp
from jax import lax
from jax.experimental import pallas as pl
from jax.experimental.pallas import tpu as pltpu


def trajsimi_kernel(x_ref, w1_ref, b1_ref, w2_ref, b2_ref, o_ref):
    # x: (tb, nin);  w1, w2: (nin, nin) in matmul dtype;  b1, b2: (1, nin) f32
    x = x_ref[...]

    # Linear 1 + ReLU  (MXU matmul in weight dtype, f32 accumulate; bias/ReLU in f32)
    h = jnp.dot(x.astype(w1_ref.dtype), w1_ref[...],
                preferred_element_type=jnp.float32) + b1_ref[...]
    h = jnp.maximum(h, 0.0)

    # Linear 2
    y = jnp.dot(h.astype(w2_ref.dtype), w2_ref[...],
                preferred_element_type=jnp.float32) + b2_ref[...]

    # F.normalize(y, dim=1) == y / max(||y||, 1e-12)  ->  y * rsqrt(max(||y||^2, 1e-24))
    sq = jnp.sum(y * y, axis=1, keepdims=True)
    inv = lax.rsqrt(jnp.maximum(sq, 1e-24))          # EUP slot (otherwise idle)
    o_ref[...] = (y * inv).astype(o_ref.dtype)


def _reference_jnp(trajs, w1, b1, w2, b2):
    h = jnp.maximum(trajs @ w1 + b1, 0.0)
    y = h @ w2 + b2
    norm = jnp.sqrt(jnp.sum(y * y, axis=1, keepdims=True))
    return y / jnp.maximum(norm, 1e-12)


def _vmem_cap_bytes():
    # Generation-aware VMEM budget: ~75% of physical (v5e/v6e: ~96 MiB, v7x: ~48 MiB).
    try:
        cap = getattr(pltpu.get_tpu_info(), "vmem_capacity_bytes", None)
        if not cap:
            cap = 64 * 1024 * 1024
    except Exception:
        cap = 64 * 1024 * 1024
    return int(cap * 3 // 4)


def trajsimi_regression(trajs, w1, b1, w2, b2, *, tile_b=4096,
                        matmul_dtype=jnp.bfloat16, out_dtype=None,
                        force_pallas=False, min_flops_for_pallas=int(1e7)):
    """trajs: (B, nin); w1, w2: (nin, nin) laid out as (in, out); b1, b2: (nin,)."""
    B, nin = trajs.shape
    out_dtype = jnp.dtype(out_dtype) if out_dtype is not None else trajs.dtype

    # Tiny workloads: a pallas_call is pure dispatch overhead -> fused XLA is faster.
    flops = 4 * B * nin * nin
    if not force_pallas and flops < min_flops_for_pallas:
        return _reference_jnp(trajs, w1, b1, w2, b2).astype(out_dtype)

    w1_c = w1.astype(matmul_dtype)
    w2_c = w2.astype(matmul_dtype)
    b1_2d = b1.reshape(1, nin).astype(jnp.float32)
    b2_2d = b2.reshape(1, nin).astype(jnp.float32)

    x_item = jnp.dtype(trajs.dtype).itemsize
    o_item = jnp.dtype(out_dtype).itemsize
    w_item = jnp.dtype(matmul_dtype).itemsize

    # Resident operands: single-buffer them once they are big enough to matter.
    single_buffer_weights = nin >= 512
    weight_bufs = 1 if single_buffer_weights else 2

    # Batch tile: biggest tile that fits the generation-aware VMEM budget.
    tb = min(int(tile_b), B)
    if tb != B:
        tb = max(8, (tb // 8) * 8)          # divisible by 8 when not the full batch dim

    vmem_cap = _vmem_cap_bytes()

    def tile_bytes(t):
        return (2 * t * nin * (x_item + o_item)            # x + out, double-buffered
                + weight_bufs * 2 * nin * nin * w_item     # w1 + w2 (resident)
                + weight_bufs * 2 * nin * 4)               # b1 + b2 (resident)

    while tb > 8 and 2 * tile_bytes(tb) > vmem_cap:        # keep ~2x headroom
        tb = max(8, (tb // 2 // 8) * 8)

    grid = (pl.cdiv(B, tb),)
    vmem_limit = int(min(max(2 * tile_bytes(tb), 4 * 1024 * 1024), vmem_cap))

    resident_kwargs = dict(pipeline_mode=pl.Buffered(1)) if single_buffer_weights else {}
    in_specs = [
        pl.BlockSpec((tb, nin), lambda i: (i, 0)),                       # x: tiled batch
        pl.BlockSpec((nin, nin), lambda i: (0, 0), **resident_kwargs),   # w1: resident
        pl.BlockSpec((1, nin), lambda i: (0, 0), **resident_kwargs),     # b1: resident
        pl.BlockSpec((nin, nin), lambda i: (0, 0), **resident_kwargs),   # w2: resident
        pl.BlockSpec((1, nin), lambda i: (0, 0), **resident_kwargs),     # b2: resident
    ]

    cost = pl.CostEstimate(
        flops=flops,                                       # two (B,nin)x(nin,nin) matmuls
        transcendentals=B,                                 # one rsqrt per row
        bytes_accessed=B * nin * (x_item + o_item) + 2 * nin * nin * w_item + 2 * nin * 4,
    )

    return pl.pallas_call(
        trajsimi_kernel,
        out_shape=jax.ShapeDtypeStruct((B, nin), out_dtype),
        grid_spec=pltpu.PrefetchScalarGridSpec(
            num_scalar_prefetch=0,
            grid=grid,
            in_specs=in_specs,
            out_specs=pl.BlockSpec((tb, nin), lambda i: (i, 0)),
        ),
        compiler_params=pltpu.CompilerParams(
            dimension_semantics=("parallel",),     # batch axis shards across TCs (v7x)
            vmem_limit_bytes=vmem_limit,
        ),
        cost_estimate=cost,
    )(trajs, w1_c, b1_2d, w2_c, b2_2d)


if __name__ == "__main__":
    key = jax.random.PRNGKey(0)
    B, NIN = 8, 32  # small shapes: batch=8, nin=32

    k_x, k_w1, k_b1, k_w2, k_b2 = jax.random.split(key, 5)
    # Deterministic init mimicking PyTorch Linear's uniform(-1/sqrt(nin), 1/sqrt(nin))
    bound = 1.0 / (NIN ** 0.5)
    trajs = jax.random.normal(k_x, (B, NIN), dtype=jnp.float32)
    w1 = jax.random.uniform(k_w1, (NIN, NIN), jnp.float32, -bound, bound)  # (in, out)
    b1 = jax.random.uniform(k_b1, (NIN,), jnp.float32, -bound, bound)
    w2 = jax.random.uniform(k_w2, (NIN, NIN), jnp.float32, -bound, bound)
    b2 = jax.random.uniform(k_b2, (NIN,), jnp.float32, -bound, bound)

    ref = _reference_jnp(trajs, w1, b1, w2, b2)

    # Strict-accuracy path (f32 matmuls) — tight tolerance.
    out_f32 = trajsimi_regression(trajs, w1, b1, w2, b2,
                                  matmul_dtype=jnp.float32, force_pallas=True)
    jax.block_until_ready(out_f32)
    assert out_f32.shape == (B, NIN)
    assert jnp.allclose(out_f32, ref, atol=1e-4, rtol=1e-4), "f32 path mismatch vs reference"

    # Default fast path (bf16 matmuls, f32 accumulation) — loosened tolerance.
    out_bf16 = trajsimi_regression(trajs, w1, b1, w2, b2, force_pallas=True)
    jax.block_until_ready(out_bf16)
    assert out_bf16.shape == (B, NIN)
    assert jnp.allclose(out_bf16, ref, atol=3e-2, rtol=3e-2), "bf16 path mismatch vs reference"

    print("KERNEL_OK")
</pallas_src>

<mosaic_0001>
module attributes {stable_mosaic.version = 11 : i64} {
  func.func @trajsimi_kernel(%arg0: i32, %arg1: memref<8x32xf32, #tpu.memory_space<vmem>>, %arg2: memref<32x32xf32, #tpu.memory_space<vmem>>, %arg3: memref<1x32xf32, #tpu.memory_space<vmem>>, %arg4: memref<32x32xf32, #tpu.memory_space<vmem>>, %arg5: memref<1x32xf32, #tpu.memory_space<vmem>>, %arg6: memref<8x32xf32, #tpu.memory_space<vmem>>) attributes {dimension_semantics = [#tpu.dimension_semantics<parallel>], iteration_bounds = array<i64: 1>, scalar_prefetch = 0 : i64, scratch_operands = 0 : i64, tpu.core_type = #tpu.core_type<tc>, window_params = [{transform_indices = @transform_0, window_bounds = array<i64: 8, 32>}, {pipeline_mode = #tpu.pipeline_mode<synchronous>, transform_indices = @transform_1, window_bounds = array<i64: 32, 32>}, {pipeline_mode = #tpu.pipeline_mode<synchronous>, transform_indices = @transform_2, window_bounds = array<i64: 1, 32>}, {pipeline_mode = #tpu.pipeline_mode<synchronous>, transform_indices = @transform_3, window_bounds = array<i64: 32, 32>}, {pipeline_mode = #tpu.pipeline_mode<synchronous>, transform_indices = @transform_4, window_bounds = array<i64: 1, 32>}, {transform_indices = @transform_5, window_bounds = array<i64: 8, 32>}]} {
    %c0 = arith.constant 0 : index
    %c0_0 = arith.constant 0 : index
    %0 = vector.load %arg1[%c0, %c0_0] : memref<8x32xf32, #tpu.memory_space<vmem>>, vector<8x32xf32>
    %c0_1 = arith.constant 0 : index
    %c0_2 = arith.constant 0 : index
    %1 = vector.load %arg2[%c0_1, %c0_2] : memref<32x32xf32, #tpu.memory_space<vmem>>, vector<32x32xf32>
    %cst = arith.constant dense<0.000000e+00> : vector<8x32xf32>
    %2 = tpu.matmul %0, %1, %cst {dimension_numbers = #tpu.dot_dimension_numbers<[1], [0], [0], [1], [0, 0, 1, 1], [], []>} : vector<8x32xf32>, vector<32x32xf32>, vector<8x32xf32> -> vector<8x32xf32>
    %c0_3 = arith.constant 0 : index
    %c0_4 = arith.constant 0 : index
    %3 = vector.load %arg3[%c0_3, %c0_4] : memref<1x32xf32, #tpu.memory_space<vmem>>, vector<1x32xf32>
    %4 = vector.broadcast %3 : vector<1x32xf32> to vector<8x32xf32>
    %5 = arith.addf %2, %4 : vector<8x32xf32>
    %cst_5 = arith.constant 0.000000e+00 : f32
    %6 = vector.broadcast %cst_5 : f32 to vector<8x32xf32>
    %7 = arith.maximumf %5, %6 : vector<8x32xf32>
    %c0_6 = arith.constant 0 : index
    %c0_7 = arith.constant 0 : index
    %8 = vector.load %arg4[%c0_6, %c0_7] : memref<32x32xf32, #tpu.memory_space<vmem>>, vector<32x32xf32>
    %cst_8 = arith.constant dense<0.000000e+00> : vector<8x32xf32>
    %9 = tpu.matmul %7, %8, %cst_8 {dimension_numbers = #tpu.dot_dimension_numbers<[1], [0], [0], [1], [0, 0, 1, 1], [], []>} : vector<8x32xf32>, vector<32x32xf32>, vector<8x32xf32> -> vector<8x32xf32>
    %c0_9 = arith.constant 0 : index
    %c0_10 = arith.constant 0 : index
    %10 = vector.load %arg5[%c0_9, %c0_10] : memref<1x32xf32, #tpu.memory_space<vmem>>, vector<1x32xf32>
    %11 = vector.broadcast %10 : vector<1x32xf32> to vector<8x32xf32>
    %12 = arith.addf %9, %11 : vector<8x32xf32>
    %13 = arith.mulf %12, %12 : vector<8x32xf32>
    %cst_11 = arith.constant dense<0.000000e+00> : vector<8xf32>
    %14 = vector.multi_reduction <add>, %13, %cst_11 [1] : vector<8x32xf32> to vector<8xf32>
    %15 = vector.shape_cast %14 : vector<8xf32> to vector<8x1xf32>
    %cst_12 = arith.constant 1.000000e-24 : f32
    %16 = vector.broadcast %cst_12 : f32 to vector<8x1xf32>
    %17 = arith.maximumf %15, %16 : vector<8x1xf32>
    %18 = math.rsqrt %17 : vector<8x1xf32>
    %19 = vector.broadcast %18 : vector<8x1xf32> to vector<8x32xf32>
    %20 = arith.mulf %12, %19 : vector<8x32xf32>
    %c0_13 = arith.constant 0 : index
    %c0_14 = arith.constant 0 : index
    %21 = vector.load %arg6[%c0_13, %c0_14] : memref<8x32xf32, #tpu.memory_space<vmem>>, vector<8x32xf32>
    tpu.vector_store %arg6[%c0_13, %c0_14], %20 {strides = array<i32>} : memref<8x32xf32, #tpu.memory_space<vmem>>, vector<8x32xf32>,
    return
  }
  func.func @transform_0(%arg0: i32) -> (i32, i32) {
    %c0_i32 = arith.constant 0 : i32
    %c0_i32_0 = arith.constant 0 : i32
    return %arg0, %c0_i32 : i32, i32
  }
  func.func @transform_1(%arg0: i32) -> (i32, i32) {
    %c0_i32 = arith.constant 0 : i32
    %c0_i32_0 = arith.constant 0 : i32
    %c0_i32_1 = arith.constant 0 : i32
    return %c0_i32, %c0_i32_0 : i32, i32
  }
  func.func @transform_2(%arg0: i32) -> (i32, i32) {
    %c0_i32 = arith.constant 0 : i32
    %c0_i32_0 = arith.constant 0 : i32
    %c0_i32_1 = arith.constant 0 : i32
    return %c0_i32, %c0_i32_0 : i32, i32
  }
  func.func @transform_3(%arg0: i32) -> (i32, i32) {
    %c0_i32 = arith.constant 0 : i32
    %c0_i32_0 = arith.constant 0 : i32
    %c0_i32_1 = arith.constant 0 : i32
    return %c0_i32, %c0_i32_0 : i32, i32
  }
  func.func @transform_4(%arg0: i32) -> (i32, i32) {
    %c0_i32 = arith.constant 0 : i32
    %c0_i32_0 = arith.constant 0 : i32
    %c0_i32_1 = arith.constant 0 : i32
    return %c0_i32, %c0_i32_0 : i32, i32
  }
  func.func @transform_5(%arg0: i32) -> (i32, i32) {
    %c0_i32 = arith.constant 0 : i32
    %c0_i32_0 = arith.constant 0 : i32
    return %arg0, %c0_i32 : i32, i32
  }
}

</mosaic_0001>

<llo_original>
// kernel: tpu_custom_call.1
$region0: #{tpu_custom_call.1}
  #allocation0 [shape = 'u32[]', space=smem, size = 0x4, offset = 0x4, fixed_abs, tag = 'smem constant byte address 0x4 - core index']
  #allocation1 [shape = 'u32[144,128]{1,0:T(1,128)}', space=vmem, size = 0x12000, scoped, tag = 'internal scratch']
  %s0 = inlined_call_operand.hbm [shape: f32[8,32], index: 0, kind: input, shape index: {}]
  %s1 = inlined_call_operand.hbm [shape: f32[32,32], index: 1, kind: input, shape index: {}]
  %s2 = inlined_call_operand.vmem [shape: f32[1,32], index: 2, kind: input, shape index: {}]
  %s3 = inlined_call_operand.hbm [shape: f32[32,32], index: 3, kind: input, shape index: {}]
  %s4 = inlined_call_operand.vmem [shape: f32[1,32], index: 4, kind: input, shape index: {}]
  %s5 = inlined_call_operand.hbm [shape: f32[8,32], index: 5, kind: output, shape index: {}]
  %s6 = sld [smem:[#allocation0]]
  $region42: #{tpu_custom_call.1} parent=0
    _
  %s8 = ssub.s32 1, %s6
  %s9 = scalar_select 0, %s8, %s6
  $region1: #{tpu_custom_call.1} parent=0
    #allocation2 [shape = 'u8[4096]{0}', space=vmem, size = 0x1000, scoped, tag = 'input window, operand 0, single buffered']
    #allocation3 [shape = 's32[1]{0}', space=sflag, size = 0x4, scoped, tag = 'scoped memory for tpu_custom_call.1']
    #allocation4 [shape = 's32[1]{0}', space=sflag, size = 0x4, scoped, tag = 'scoped memory for tpu_custom_call.1']
    #allocation5 [shape = 'u8[16384]{0}', space=vmem, size = 0x4000, scoped, tag = 'input window, operand 1, single buffered']
    #allocation6 [shape = 's32[1]{0}', space=sflag, size = 0x4, scoped, tag = 'scoped memory for tpu_custom_call.1']
    #allocation7 [shape = 'u8[16384]{0}', space=vmem, size = 0x4000, scoped, tag = 'input window, operand 3, single buffered']
    #allocation8 [shape = 'u8[4096]{0}', space=vmem, size = 0x1000, scoped, tag = 'output window, operand 0, single buffered']
    %10 = vsyncpa [#allocation3], 0
    %11 = vsyncpa [#allocation6], 0
    %12 = vsyncpa [#allocation4], 0
    // Predicated region
    $region2: #{tpu_custom_call.1} parent=1 // pred_check
      _
    $region3: #{tpu_custom_call.1} parent=1 // pred_check_branch
      %14 = sbr.rel (0) target = $region5
    $region4: #{tpu_custom_call.1} parent=1 // pred_region
      %s16 = ssub.s32 128, 128
      %17 = vsyncadd [#allocation3], %s16
      %s19 = sshll.u32 [#allocation2], 4
      %s20 = int_to_ptr.vmem [resolvable:$true] %s19
      %22 = dma.hbm_to_vmem [thread:$0]  %s0, 128, %s20, [#allocation3]
    $region5: #{tpu_custom_call.1} parent=1 // pred_fallthru
      _
    // Predicated region
    $region6: #{tpu_custom_call.1} parent=1 // pred_check
      _
    $region7: #{tpu_custom_call.1} parent=1 // pred_check_branch
      %24 = sbr.rel (0) target = $region9
    $region8: #{tpu_custom_call.1} parent=1 // pred_region
      %s26 = ssub.s32 512, 512
      %27 = vsyncadd [#allocation6], %s26
      %s28 = sshll.u32 [#allocation5], 4
      %s29 = int_to_ptr.vmem [resolvable:$true] %s28
      %34 = dma.hbm_to_vmem [thread:$0]  %s1, 512, %s29, [#allocation6], 128, 128, 8
    $region9: #{tpu_custom_call.1} parent=1 // pred_fallthru
      _
    // Predicated region
    $region10: #{tpu_custom_call.1} parent=1 // pred_check
      _
    $region11: #{tpu_custom_call.1} parent=1 // pred_check_branch
      %36 = sbr.rel (0) target = $region13
    $region12: #{tpu_custom_call.1} parent=1 // pred_region
      _
    $region13: #{tpu_custom_call.1} parent=1 // pred_fallthru
      _
    // Predicated region
    $region14: #{tpu_custom_call.1} parent=1 // pred_check
      _
    $region15: #{tpu_custom_call.1} parent=1 // pred_check_branch
      %38 = sbr.rel (0) target = $region17
    $region16: #{tpu_custom_call.1} parent=1 // pred_region
      %s40 = ssub.s32 512, 512
      %41 = vsyncadd [#allocation6], %s40
      %s42 = sshll.u32 [#allocation7], 4
      %s43 = int_to_ptr.vmem [resolvable:$true] %s42
      %48 = dma.hbm_to_vmem [thread:$0]  %s3, 512, %s43, [#allocation6], 128, 128, 8
    $region17: #{tpu_custom_call.1} parent=1 // pred_fallthru
      _
    // Predicated region
    $region18: #{tpu_custom_call.1} parent=1 // pred_check
      _
    $region19: #{tpu_custom_call.1} parent=1 // pred_check_branch
      %50 = sbr.rel (0) target = $region21
    $region20: #{tpu_custom_call.1} parent=1 // pred_region
      _
    $region21: #{tpu_custom_call.1} parent=1 // pred_fallthru
      _
    // Predicated region
    $region22: #{tpu_custom_call.1} parent=1 // pred_check
      _
    $region23: #{tpu_custom_call.1} parent=1 // pred_check_branch
      %52 = sbr.rel (0) target = $region25
    $region24: #{tpu_custom_call.1} parent=1 // pred_region
      %53 = dma.done [#allocation3], 128
    $region25: #{tpu_custom_call.1} parent=1 // pred_fallthru
      _
    // Predicated region
    $region26: #{tpu_custom_call.1} parent=1 // pred_check
      _
    $region27: #{tpu_custom_call.1} parent=1 // pred_check_branch
      %55 = sbr.rel (0) target = $region29
    $region28: #{tpu_custom_call.1} parent=1 // pred_region
      %56 = dma.done [#allocation6], 512
    $region29: #{tpu_custom_call.1} parent=1 // pred_fallthru
      _
    // Predicated region
    $region30: #{tpu_custom_call.1} parent=1 // pred_check
      _
    $region31: #{tpu_custom_call.1} parent=1 // pred_check_branch
      %58 = sbr.rel (0) target = $region33
    $region32: #{tpu_custom_call.1} parent=1 // pred_region
      %59 = dma.done [#allocation6], 512
    $region33: #{tpu_custom_call.1} parent=1 // pred_fallthru
      _
    %v60 = vld [vmem:[#allocation2] sm:$0xff]
    %v61 = vld [vmem:[#allocation5] sm:$0xff]
    %v62 = vld [vmem:[#allocation5 + $0x8] sm:$0xff]
    %v63 = vld [vmem:[#allocation5 + $0x10] sm:$0xff]
    %v64 = vld [vmem:[#allocation5 + $0x18] sm:$0xff]
    %v65 = vld [vmem:[%s2] sm:$0x1]
    %v67 = vlaneseq
    %v68 = vshrl.u32 %v67, 7
    %v69 = vsub.s32 0, %v68
    %v70 = vrot.slane %v65, %v69
    %vm72 = vcmask 261120
    %v74 = vsel %vm72, %v60, 0
    %76 = vmatprep.subr.mxu0 0.0
    %77 = vmatpush1.msra.mxu0 %v61
    %78 = vmatprep.subr.mxu0 0.0
    %79 = vmatpush1.msra.mxu0 %v62
    %80 = vmatprep.subr.mxu0 0.0
    %81 = vmatpush1.msra.mxu0 %v63
    %82 = vmatprep.subr.mxu0 0.0
    %83 = vmatpush1.msra.mxu0 %v64
    %84 = vmatprep.subr.mxu0 0.0
    %85 = vmatpush1.msra.mxu0 0.0
    %86 = vmatprep.subr.mxu0 0.0
    %87 = vmatpush1.msra.mxu0 0.0
    %88 = vmatprep.subr.mxu0 0.0
    %89 = vmatpush1.msra.mxu0 0.0
    %90 = vmatprep.subr.mxu0 0.0
    %91 = vmatpush1.msra.mxu0 0.0
    %92 = vmatprep.subr.mxu0 0.0
    %93 = vmatpush1.msra.mxu0 0.0
    %94 = vmatprep.subr.mxu0 0.0
    %95 = vmatpush1.msra.mxu0 0.0
    %96 = vmatprep.subr.mxu0 0.0
    %97 = vmatpush1.msra.mxu0 0.0
    %98 = vmatprep.subr.mxu0 0.0
    %99 = vmatpush1.msra.mxu0 0.0
    %100 = vmatprep.subr.mxu0 0.0
    %101 = vmatpush1.msra.mxu0 0.0
    %102 = vmatprep.subr.mxu0 0.0
    %103 = vmatpush1.msra.mxu0 0.0
    %104 = vmatprep.subr.mxu0 0.0
    %105 = vmatpush1.msra.mxu0 0.0
    %106 = vmatprep.subr.mxu0 0.0
    %107 = vmatpush1.msra.mxu0 0.0
    %108 = vmatprep.subr.mxu0 0.0
    %109 = vmatpush1.msra.mxu0 0.0
    %110 = vmatprep.subr.mxu0 0.0
    %111 = vmatpush1.msra.mxu0 0.0
    %112 = vmatprep.subr.mxu0 0.0
    %113 = vmatpush1.msra.mxu0 0.0
    %114 = vmatprep.subr.mxu0 0.0
    %115 = vmatpush1.msra.mxu0 0.0
    %116 = vmatprep.subr.mxu0 0.0
    %117 = vmatpush1.msra.mxu0 0.0
    %118 = vmatprep.subr.mxu0 0.0
    %119 = vmatpush1.msra.mxu0 0.0
    %120 = vmatprep.subr.mxu0 0.0
    %121 = vmatpush1.msra.mxu0 0.0
    %122 = vmatprep.subr.mxu0 0.0
    %123 = vmatpush1.msra.mxu0 0.0
    %124 = vmatprep.subr.mxu0 0.0
    %125 = vmatpush1.msra.mxu0 0.0
    %126 = vmatprep.subr.mxu0 0.0
    %127 = vmatpush1.msra.mxu0 0.0
    %128 = vmatprep.subr.mxu0 0.0
    %129 = vmatpush1.msra.mxu0 0.0
    %130 = vmatprep.subr.mxu0 0.0
    %131 = vmatpush1.msra.mxu0 0.0
    %132 = vmatprep.subr.mxu0 0.0
    %133 = vmatpush1.msra.mxu0 0.0
    %134 = vmatprep.subr.mxu0 0.0
    %135 = vmatpush1.msra.mxu0 0.0
    %136 = vmatprep.subr.mxu0 0.0
    %137 = vmatpush1.msra.mxu0 0.0
    %138 = vmatprep.subr.mxu0 0.0
    %139 = vmatpush1.msra.mxu0 0.0
    %140 = vmatprep.mubr.f32.mxu0 0.0
    %141 = vmatmul.mubr.f32.gmra.mrb[0].mxu0 %v74
    %v142 = vpop.f32.mrb[0].mxu0
    %v143 = vadd.f32 %v70, %v142
    %v144 = vpop.f32.mrb[0].mxu0
    %145 = vdwg.mxu0
    %v146 = vmax.f32 %v143, 0.0
    %v147 = vld [vmem:[#allocation7] sm:$0xff]
    %v148 = vld [vmem:[#allocation7 + $0x8] sm:$0xff]
    %v149 = vld [vmem:[#allocation7 + $0x10] sm:$0xff]
    %v150 = vld [vmem:[#allocation7 + $0x18] sm:$0xff]
    %v151 = vld [vmem:[%s4] sm:$0x1]
    %v153 = vlaneseq
    %v154 = vshrl.u32 %v153, 7
    %v155 = vsub.s32 0, %v154
    %v156 = vrot.slane %v151, %v155
    %v159 = vsel %vm72, %v146, 0
    %161 = vmatprep.subr.mxu0 0.0
    %162 = vmatpush1.msra.mxu0 %v147
    %163 = vmatprep.subr.mxu0 0.0
    %164 = vmatpush1.msra.mxu0 %v148
    %165 = vmatprep.subr.mxu0 0.0
    %166 = vmatpush1.msra.mxu0 %v149
    %167 = vmatprep.subr.mxu0 0.0
    %168 = vmatpush1.msra.mxu0 %v150
    %169 = vmatprep.subr.mxu0 0.0
    %170 = vmatpush1.msra.mxu0 0.0
    %171 = vmatprep.subr.mxu0 0.0
    %172 = vmatpush1.msra.mxu0 0.0
    %173 = vmatprep.subr.mxu0 0.0
    %174 = vmatpush1.msra.mxu0 0.0
    %175 = vmatprep.subr.mxu0 0.0
    %176 = vmatpush1.msra.mxu0 0.0
    %177 = vmatprep.subr.mxu0 0.0
    %178 = vmatpush1.msra.mxu0 0.0
    %179 = vmatprep.subr.mxu0 0.0
    %180 = vmatpush1.msra.mxu0 0.0
    %181 = vmatprep.subr.mxu0 0.0
    %182 = vmatpush1.msra.mxu0 0.0
    %183 = vmatprep.subr.mxu0 0.0
    %184 = vmatpush1.msra.mxu0 0.0
    %185 = vmatprep.subr.mxu0 0.0
    %186 = vmatpush1.msra.mxu0 0.0
    %187 = vmatprep.subr.mxu0 0.0
    %188 = vmatpush1.msra.mxu0 0.0
    %189 = vmatprep.subr.mxu0 0.0
    %190 = vmatpush1.msra.mxu0 0.0
    %191 = vmatprep.subr.mxu0 0.0
    %192 = vmatpush1.msra.mxu0 0.0
    %193 = vmatprep.subr.mxu0 0.0
    %194 = vmatpush1.msra.mxu0 0.0
    %195 = vmatprep.subr.mxu0 0.0
    %196 = vmatpush1.msra.mxu0 0.0
    %197 = vmatprep.subr.mxu0 0.0
    %198 = vmatpush1.msra.mxu0 0.0
    %199 = vmatprep.subr.mxu0 0.0
    %200 = vmatpush1.msra.mxu0 0.0
    %201 = vmatprep.subr.mxu0 0.0
    %202 = vmatpush1.msra.mxu0 0.0
    %203 = vmatprep.subr.mxu0 0.0
    %204 = vmatpush1.msra.mxu0 0.0
    %205 = vmatprep.subr.mxu0 0.0
    %206 = vmatpush1.msra.mxu0 0.0
    %207 = vmatprep.subr.mxu0 0.0
    %208 = vmatpush1.msra.mxu0 0.0
    %209 = vmatprep.subr.mxu0 0.0
    %210 = vmatpush1.msra.mxu0 0.0
    %211 = vmatprep.subr.mxu0 0.0
    %212 = vmatpush1.msra.mxu0 0.0
    %213 = vmatprep.subr.mxu0 0.0
    %214 = vmatpush1.msra.mxu0 0.0
    %215 = vmatprep.subr.mxu0 0.0
    %216 = vmatpush1.msra.mxu0 0.0
    %217 = vmatprep.subr.mxu0 0.0
    %218 = vmatpush1.msra.mxu0 0.0
    %219 = vmatprep.subr.mxu0 0.0
    %220 = vmatpush1.msra.mxu0 0.0
    %221 = vmatprep.subr.mxu0 0.0
    %222 = vmatpush1.msra.mxu0 0.0
    %223 = vmatprep.subr.mxu0 0.0
    %224 = vmatpush1.msra.mxu0 0.0
    %225 = vmatprep.mubr.f32.mxu0 0.0
    %226 = vmatmul.mubr.f32.gmra.mrb[0].mxu0 %v159
    %v227 = vpop.f32.mrb[0].mxu0
    %v228 = vadd.f32 %v156, %v227
    %v229 = vpop.f32.mrb[0].mxu0
    %230 = vdwg.mxu0
    %v231 = vmul.f32 %v228, %v228
    %v232 = vsel %vm72, %v231, 0.0
    %233 = vadd.xlane.f32.xlu0 %v232
    %v234 = vpop.xlane.xlu0 %233
    %v235 = vmax.f32 %v234, 1e-24
    %v236 = vrsqrt.pop %v235
    %v237 = vmul.f32 %v228, %v236
    %238 = vst.msk [vmem:[#allocation8] sm:$0xff] %vm72, %v237
    // Predicated region
    $region34: #{tpu_custom_call.1} parent=1 // pred_check
      _
    $region35: #{tpu_custom_call.1} parent=1 // pred_check_branch
      %240 = sbr.rel (0) target = $region37
    $region36: #{tpu_custom_call.1} parent=1 // pred_region
      %s242 = ssub.s32 128, 128
      %243 = vsyncadd [#allocation4], %s242
      %s245 = sshll.u32 [#allocation8], 4
      %s246 = int_to_ptr.vmem [resolvable:$true] %s245
      %248 = dma.vmem_to_hbm [thread:$0]  %s246, 128, %s5, [#allocation4]
    $region37: #{tpu_custom_call.1} parent=1 // pred_fallthru
      _
    // Predicated region
    $region38: #{tpu_custom_call.1} parent=1 // pred_check
      _
    $region39: #{tpu_custom_call.1} parent=1 // pred_check_branch
      %250 = sbr.rel (0) target = $region41
    $region40: #{tpu_custom_call.1} parent=1 // pred_region
      %251 = dma.done [#allocation4], 128
    $region41: #{tpu_custom_call.1} parent=1 // pred_fallthru
      _
    %252 = vsyncpa [#allocation3], 1
    %253 = vsyncpa [#allocation6], 1
    %254 = vsyncpa [#allocation4], 1

</llo_original>
